<compile_context>
chip_gen: v6e
topology: v6e:2x2x1
jax: 0.10.0
libtpu: 0.0.40
codegen_flags: <defaults>
</compile_context>

<pallas_src>
import math
import functools

import jax
import jax.numpy as jnp
from jax.experimental import pallas as pl
from jax.experimental.pallas import tpu as pltpu


def _round_up(v, m):
    return (v + m - 1) // m * m


def _cdiv(a, b):
    return -(-a // b)


def _pick_batch_tile(n, row_bytes, f_pad, budget_bytes=12 << 20, prefer=4096):
    """Largest multiple-of-8 batch tile whose double-buffered input tiles plus
    the ~(tb, Fpad) f32 kernel temporaries fit the VMEM budget."""
    per_row = 4 * row_bytes + 12 * f_pad            # 2x double-buffer + ~3 f32 temps
    cap = max(8, min(prefer, budget_bytes // max(1, per_row)))
    cap -= cap % 8
    cap = max(cap, 8)
    n8 = _round_up(n, 8)
    if n8 <= cap:
        return n8
    # prefer a divisor of the 8-padded batch so no extra row padding is needed
    for tb in range(cap, 7, -8):
        if n8 % tb == 0:
            return tb
    return cap                                      # batch gets padded to a multiple


def _vfae_kernel(n_rows,
                 y_ref, ylog_ref, s_ref, z1_ref, w_ref, b_ref,
                 k1_lv1_ref, k1_lv2_ref, k1_mu1_ref, k1_mu2_ref,
                 k2_lv1_ref, k2_lv2_ref, bce_lg_ref, bce_tg_ref,
                 mmd_ref, misc_ref):
    t = pl.program_id(0)

    @pl.when(t == 0)
    def _init():
        mmd_ref[...] = jnp.zeros_like(mmd_ref)
        misc_ref[...] = jnp.zeros_like(misc_ref)

    tb = s_ref.shape[0]

    # -------- row validity (batch may be zero-padded to a tile multiple) ------
    row_id = jax.lax.broadcasted_iota(jnp.int32, (tb, 1), 0) + t * tb
    valid = row_id < n_rows                                    # (tb, 1) bool

    # -------- CrossEntropy partial: sum of per-row NLL over valid rows --------
    logits = ylog_ref[...].astype(jnp.float32)                 # (tb, C)
    labels = y_ref[...]                                        # (tb, 1) int32
    c = logits.shape[1]
    cls = jax.lax.broadcasted_iota(jnp.int32, (tb, c), 1)
    picked = jnp.sum(jnp.where(cls == labels, logits, 0.0), axis=1, keepdims=True)
    m = jnp.max(logits, axis=1, keepdims=True)
    lse = m + jnp.log(jnp.sum(jnp.exp(logits - m), axis=1, keepdims=True))
    ce_part = jnp.sum(jnp.where(valid, lse - picked, 0.0))

    # -------- KL partials on lane-dense flattened tiles ------------------------
    # * exp(-lv2) instead of / exp(lv2).  Zero-padded tail elements give exactly
    #   0 - 0 - 1 + (1 + 0) * 1 = 0, so no masking is needed.
    lv1 = k1_lv1_ref[...].astype(jnp.float32)
    lv2 = k1_lv2_ref[...].astype(jnp.float32)
    mu1 = k1_mu1_ref[...].astype(jnp.float32)
    mu2 = k1_mu2_ref[...].astype(jnp.float32)
    kl1 = lv2 - lv1 - 1.0 + (jnp.exp(lv1) + jnp.square(mu1 - mu2)) * jnp.exp(-lv2)
    kl1_vec = jnp.sum(kl1, axis=0, keepdims=True)              # (1, 128)

    # NOTE: reproduces the reference literally — z2_enc_mean occupies the
    # "logvar_z2" slot and both means are zero. Do not "fix" independently.
    alv1 = k2_lv1_ref[...].astype(jnp.float32)
    alv2 = k2_lv2_ref[...].astype(jnp.float32)
    kl2 = alv2 - alv1 - 1.0 + jnp.exp(alv1) * jnp.exp(-alv2)
    kl2_vec = jnp.sum(kl2, axis=0, keepdims=True)              # (1, 128)

    # -------- BCEWithLogits partial on lane-dense flattened tiles --------------
    lg = bce_lg_ref[...].astype(jnp.float32)
    tg = bce_tg_ref[...].astype(jnp.float32)
    bce = jnp.maximum(lg, 0.0) - lg * tg + jnp.log1p(jnp.exp(-jnp.abs(lg)))
    bce_vec = jnp.sum(bce, axis=0, keepdims=True)              # (1, 128)

    # -------- Fast-MMD: psi and per-group column sums via the MXU --------------
    z1 = z1_ref[...].astype(jnp.float32)                       # (tb, dz1)
    proj = jnp.dot(z1, w_ref[...], preferred_element_type=jnp.float32) + b_ref[...]
    psi = jnp.cos(proj)        # proj_scale folded into w/b; psi_scale at finalize

    sv = s_ref[...].astype(jnp.float32)                        # (tb, 1)
    mask_s = jnp.where(valid, (sv == 1.0).astype(jnp.float32), 0.0)
    mask_n = jnp.where(valid, (sv == 0.0).astype(jnp.float32), 0.0)
    lane8 = jax.lax.broadcasted_iota(jnp.int32, (tb, 8), 1)
    masks = (jnp.where(lane8 == 0, mask_s, 0.0)
             + jnp.where(lane8 == 1, mask_n, 0.0))             # (tb, 8)
    # (tb, 8)^T @ (tb, Fpad) on the MXU -> (8, Fpad); rows 0/1 are the group sums.
    group_sums = jax.lax.dot_general(masks, psi, (((0,), (0,)), ((), ())),
                                     preferred_element_type=jnp.float32)
    cnt_s = jnp.sum(mask_s)
    cnt_n = jnp.sum(mask_n)

    # -------- accumulate: (8, Fpad) MMD block + one-vreg (8, 128) misc block ---
    mmd_ref[...] += group_sums

    sub = jax.lax.broadcasted_iota(jnp.int32, (8, 128), 0)
    lane = jax.lax.broadcasted_iota(jnp.int32, (8, 128), 1)
    scal_vec = (jnp.where(lane == 0, ce_part, 0.0)
                + jnp.where(lane == 1, cnt_s, 0.0)
                + jnp.where(lane == 2, cnt_n, 0.0))
    misc_ref[...] += (jnp.where(sub == 0, kl1_vec, 0.0)
                      + jnp.where(sub == 1, kl2_vec, 0.0)
                      + jnp.where(sub == 2, bce_vec, 0.0)
                      + jnp.where(sub == 3, scal_vec, 0.0))


def make_vfae_loss(alpha, beta, gamma, dims_out):
    alpha = float(alpha)
    beta = float(beta)
    gamma = float(gamma)
    features_out = int(dims_out)
    psi_scale = math.sqrt(2.0 / features_out)
    proj_scale = math.sqrt(2.0 / gamma)

    @jax.jit
    def run(x, s, y, y_logits, x_pred,
            z1_enc_logvar, z1_dec_logvar, z1_enc_mean, z1_dec_mean,
            z2_enc_logvar, z2_enc_mean, z1_enc, w, b):
        n, dx = x.shape
        c = y_logits.shape[-1]
        dz1 = z1_enc_logvar.shape[-1]
        dz2 = z2_enc_logvar.shape[-1]
        f = features_out
        f_pad = _round_up(f, 128)

        # ---- fold the projection scale into w/b (removes two (tb, Fpad) VPU
        # multiplies per tile); psi_scale is applied once at finalization. -----
        w32 = w.astype(jnp.float32) * proj_scale
        b32 = b.astype(jnp.float32).reshape(1, -1) * proj_scale
        if f_pad != f:
            w32 = jnp.pad(w32, ((0, 0), (0, f_pad - f)))
            b32 = jnp.pad(b32, ((0, 0), (0, f_pad - f)))

        # ---- batch tiling (pad N to a tile multiple; pad rows masked in-kernel)
        row_bytes = 4 * (1 + c + 1 + dz1 + 4 * dz1 + 2 * dz2 + 2 * (dx + 1))
        tb = _pick_batch_tile(n, row_bytes, f_pad)
        n_pad = _round_up(n, tb)
        n_tiles = n_pad // tb

        def pad_rows(a, value=0):
            if n_pad == n:
                return a
            cfg = [(0, n_pad - n)] + [(0, 0)] * (a.ndim - 1)
            return jnp.pad(a, cfg, constant_values=value)

        # row-structured operands (native dtype; cast to f32 inside the kernel)
        s_col = s.reshape(n, 1)
        y_rows = pad_rows(y.reshape(n, 1).astype(jnp.int32))
        ylog_rows = pad_rows(y_logits)
        s_rows = pad_rows(s_col)
        z1_rows = pad_rows(z1_enc)

        # lane-dense flattened operands for the pure element-sum losses
        def flat(a, total, value=0.0):
            v = a.reshape(-1)
            if v.shape[0] != total:
                v = jnp.pad(v, (0, total - v.shape[0]), constant_values=value)
            return v.reshape(total // 128, 128)

        r1 = _round_up(_cdiv(n * dz1, n_tiles * 128), 8)
        r2 = _round_up(_cdiv(n * dz2, n_tiles * 128), 8)
        r3 = _round_up(_cdiv(n * (dx + 1), n_tiles * 128), 8)
        e1 = n_tiles * r1 * 128
        e2 = n_tiles * r2 * 128
        e3 = n_tiles * r3 * 128

        k1_lv1 = flat(z1_enc_logvar, e1)          # zero pad -> exactly 0 KL term
        k1_lv2 = flat(z1_dec_logvar, e1)
        k1_mu1 = flat(z1_enc_mean, e1)
        k1_mu2 = flat(z1_dec_mean, e1)
        k2_lv1 = flat(z2_enc_logvar, e2)
        k2_lv2 = flat(z2_enc_mean, e2)
        x_s = jnp.concatenate([x, s_col.astype(x.dtype)], axis=-1)
        bce_tg = flat(x_s, e3, 0.0)
        bce_lg = flat(x_pred, e3, -1e4)           # -1e4 logit + 0 target -> exactly 0

        def row_map(t):
            return (t, 0)

        def const_map(t):
            return (0, 0)

        kern = functools.partial(_vfae_kernel, n)

        total_elems = n * (c + 4 * dz1 + 2 * dz2 + 2 * (dx + 1))
        cost = pl.CostEstimate(
            flops=int(2 * n_pad * f_pad * (dz1 + 8) + 12 * total_elems),
            transcendentals=int(n_pad * f_pad + n * c
                                + 2 * n * (2 * dz1 + dz2) + 2 * n * (dx + 1)),
            bytes_accessed=int(4 * total_elems + 4 * (dz1 + 1) * f_pad
                               + 4 * 8 * (f_pad + 128)),
        )

        mmd_acc, misc = pl.pallas_call(
            kern,
            out_shape=(jax.ShapeDtypeStruct((8, f_pad), jnp.float32),
                       jax.ShapeDtypeStruct((8, 128), jnp.float32)),
            grid_spec=pltpu.PrefetchScalarGridSpec(
                num_scalar_prefetch=0,
                grid=(n_tiles,),
                in_specs=[
                    pl.BlockSpec((tb, 1), row_map),          # y labels (int32)
                    pl.BlockSpec((tb, c), row_map),          # y_pred logits
                    pl.BlockSpec((tb, 1), row_map),          # s
                    pl.BlockSpec((tb, dz1), row_map),        # z1_enc
                    pl.BlockSpec((dz1, f_pad), const_map),   # w (resident)
                    pl.BlockSpec((1, f_pad), const_map),     # b (resident)
                    pl.BlockSpec((r1, 128), row_map),        # KL1 logvar_z1
                    pl.BlockSpec((r1, 128), row_map),        # KL1 logvar_z2
                    pl.BlockSpec((r1, 128), row_map),        # KL1 mu_z1
                    pl.BlockSpec((r1, 128), row_map),        # KL1 mu_z2
                    pl.BlockSpec((r2, 128), row_map),        # KL2 logvar slot
                    pl.BlockSpec((r2, 128), row_map),        # KL2 mean-as-logvar slot
                    pl.BlockSpec((r3, 128), row_map),        # BCE logits
                    pl.BlockSpec((r3, 128), row_map),        # BCE targets
                ],
                out_specs=[pl.BlockSpec((8, f_pad), const_map),
                           pl.BlockSpec((8, 128), const_map)],
            ),
            compiler_params=pltpu.CompilerParams(
                # TODO(synk): on v7x, add a leading CORE_PARALLEL axis of size 2
                # (with per-core output blocks) to shard tiles over both TCs.
                dimension_semantics=("arbitrary",),
                vmem_limit_bytes=32 * 1024 * 1024,
            ),
            cost_estimate=cost,
        )(y_rows, ylog_rows, s_rows, z1_rows, w32, b32,
          k1_lv1, k1_lv2, k1_mu1, k1_mu2, k2_lv1, k2_lv2, bce_lg, bce_tg)

        # ---- tiny scalar finalization (cross-lane reductions deferred here) ---
        kl1_sum = jnp.sum(misc[0])
        kl2_sum = jnp.sum(misc[1])
        bce_sum = jnp.sum(misc[2])
        ce_sum = misc[3, 0]
        cnt_s = misc[3, 1]
        cnt_n = misc[3, 2]

        ce = ce_sum / n
        bce_loss = bce_sum / (n * (dx + 1))
        kl1 = 0.5 * kl1_sum / n
        kl2 = 0.5 * kl2_sum / n

        mean_s = psi_scale * mmd_acc[0] / cnt_s       # NaN if group empty (as torch)
        mean_n = psi_scale * mmd_acc[1] / cnt_n
        lane_valid = (jnp.arange(f_pad) < f).astype(jnp.float32)
        diff = (mean_s - mean_n) * lane_valid
        mmd = jnp.sqrt(jnp.sum(diff * diff))

        loss = alpha * ce + kl1 + kl2 + bce_loss
        loss = loss + jnp.where(cnt_s > 0.0, beta * mmd, 0.0)
        return loss

    return run


if __name__ == "__main__":
    # small, deterministic example shapes
    N, Dx, Ds, C = 8, 16, 1, 2
    Dz1 = Dz2 = 8
    ALPHA, BETA, GAMMA, DIMS_OUT = 1.0, 1.0, 1.0, 64

    key = jax.random.PRNGKey(0)
    ks = jax.random.split(key, 16)
    f32 = jnp.float32

    x = jax.random.uniform(ks[0], (N, Dx), dtype=f32)            # targets in [0,1]
    s = (jnp.arange(N) % 2).astype(f32).reshape(N, 1)            # both groups present
    y = jax.random.randint(ks[1], (N, 1), 0, C)

    y_pred_logits = jax.random.normal(ks[2], (N, C), dtype=f32)
    x_pred = jax.random.normal(ks[3], (N, Dx + Ds), dtype=f32)
    z1_enc_logvar = 0.1 * jax.random.normal(ks[4], (N, Dz1), dtype=f32)
    z1_dec_logvar = 0.1 * jax.random.normal(ks[5], (N, Dz1), dtype=f32)
    z1_enc_mean = jax.random.normal(ks[6], (N, Dz1), dtype=f32)
    z1_dec_mean = jax.random.normal(ks[7], (N, Dz1), dtype=f32)
    z2_enc_logvar = 0.1 * jax.random.normal(ks[8], (N, Dz2), dtype=f32)
    z2_enc_mean = 0.1 * jax.random.normal(ks[9], (N, Dz2), dtype=f32)
    z1_enc = jax.random.normal(ks[10], (N, Dz1), dtype=f32)

    # Fast_MMD "parameters": torch draws them randomly each forward; here they
    # are deterministic explicit inputs.
    w_mmd = jax.random.normal(ks[11], (Dz1, DIMS_OUT), dtype=f32)
    b_mmd = jax.random.uniform(ks[12], (1, DIMS_OUT), dtype=f32,
                               minval=0.0, maxval=2.0 * math.pi)

    vfae_loss = make_vfae_loss(ALPHA, BETA, GAMMA, DIMS_OUT)
    loss = vfae_loss(x, s, y, y_pred_logits, x_pred,
                     z1_enc_logvar, z1_dec_logvar, z1_enc_mean, z1_dec_mean,
                     z2_enc_logvar, z2_enc_mean, z1_enc, w_mmd, b_mmd)
    loss = jax.block_until_ready(loss)
    assert bool(jnp.isfinite(loss)), f"non-finite loss: {loss}"

    # pure-JAX reference (loose tolerance: matmul precision / reduction order)
    def reference():
        x_s = jnp.concatenate([x, s], axis=-1)
        labels = y.reshape(-1).astype(jnp.int32)
        lse = jax.scipy.special.logsumexp(y_pred_logits, axis=-1)
        picked = jnp.take_along_axis(y_pred_logits, labels[:, None], axis=-1)[:, 0]
        ce = jnp.mean(lse - picked)
        bce = jnp.mean(jnp.maximum(x_pred, 0.0) - x_pred * x_s
                       + jnp.log1p(jnp.exp(-jnp.abs(x_pred))))

        def kl(lv1, lv2, mu1, mu2):
            per = lv2 - lv1 - 1.0 + (jnp.exp(lv1) + (mu1 - mu2) ** 2) / jnp.exp(lv2)
            return jnp.mean(0.5 * jnp.sum(per, axis=1))

        kl1 = kl(z1_enc_logvar, z1_dec_logvar, z1_enc_mean, z1_dec_mean)
        kl2 = kl(z2_enc_logvar, z2_enc_mean,
                 jnp.zeros_like(z2_enc_logvar), jnp.zeros_like(z2_enc_logvar))
        ps = math.sqrt(2.0 / DIMS_OUT) * jnp.cos(
            math.sqrt(2.0 / GAMMA) * (z1_enc @ w_mmd + b_mmd))
        sel_s = s[:, 0] == 1.0
        sel_n = s[:, 0] == 0.0
        mean_s = jnp.sum(jnp.where(sel_s[:, None], ps, 0.0), 0) / jnp.sum(sel_s)
        mean_n = jnp.sum(jnp.where(sel_n[:, None], ps, 0.0), 0) / jnp.sum(sel_n)
        mmd = jnp.sqrt(jnp.sum((mean_s - mean_n) ** 2))
        out = ALPHA * ce + kl1 + kl2 + bce
        return out + jnp.where(jnp.sum(sel_s) > 0, BETA * mmd, 0.0)

    ref = jax.block_until_ready(reference())
    assert abs(float(loss) - float(ref)) < 5e-2, f"mismatch: {loss} vs {ref}"
    print("KERNEL_OK")
</pallas_src>

<mosaic_0001>
module attributes {stable_mosaic.version = 11 : i64} {
  func.func @_vfae_kernel(%arg0: i32, %arg1: memref<8x1xi32, #tpu.memory_space<vmem>>, %arg2: memref<8x2xf32, #tpu.memory_space<vmem>>, %arg3: memref<8x1xf32, #tpu.memory_space<vmem>>, %arg4: memref<8x8xf32, #tpu.memory_space<vmem>>, %arg5: memref<8x128xf32, #tpu.memory_space<vmem>>, %arg6: memref<1x128xf32, #tpu.memory_space<vmem>>, %arg7: memref<8x128xf32, #tpu.memory_space<vmem>>, %arg8: memref<8x128xf32, #tpu.memory_space<vmem>>, %arg9: memref<8x128xf32, #tpu.memory_space<vmem>>, %arg10: memref<8x128xf32, #tpu.memory_space<vmem>>, %arg11: memref<8x128xf32, #tpu.memory_space<vmem>>, %arg12: memref<8x128xf32, #tpu.memory_space<vmem>>, %arg13: memref<8x128xf32, #tpu.memory_space<vmem>>, %arg14: memref<8x128xf32, #tpu.memory_space<vmem>>, %arg15: memref<8x128xf32, #tpu.memory_space<vmem>>, %arg16: memref<8x128xf32, #tpu.memory_space<vmem>>) attributes {dimension_semantics = [#tpu.dimension_semantics<arbitrary>], iteration_bounds = array<i64: 1>, scalar_prefetch = 0 : i64, scratch_operands = 0 : i64, tpu.core_type = #tpu.core_type<tc>, window_params = [{transform_indices = @transform_0, window_bounds = array<i64: 8, 1>}, {transform_indices = @transform_1, window_bounds = array<i64: 8, 2>}, {transform_indices = @transform_2, window_bounds = array<i64: 8, 1>}, {transform_indices = @transform_3, window_bounds = array<i64: 8, 8>}, {pipeline_mode = #tpu.pipeline_mode<synchronous>, transform_indices = @transform_4, window_bounds = array<i64: 8, 128>}, {pipeline_mode = #tpu.pipeline_mode<synchronous>, transform_indices = @transform_5, window_bounds = array<i64: 1, 128>}, {transform_indices = @transform_6, window_bounds = array<i64: 8, 128>}, {transform_indices = @transform_7, window_bounds = array<i64: 8, 128>}, {transform_indices = @transform_8, window_bounds = array<i64: 8, 128>}, {transform_indices = @transform_9, window_bounds = array<i64: 8, 128>}, {transform_indices = @transform_10, window_bounds = array<i64: 8, 128>}, {transform_indices = @transform_11, window_bounds = array<i64: 8, 128>}, {transform_indices = @transform_12, window_bounds = array<i64: 8, 128>}, {transform_indices = @transform_13, window_bounds = array<i64: 8, 128>}, {pipeline_mode = #tpu.pipeline_mode<synchronous>, transform_indices = @transform_14, window_bounds = array<i64: 8, 128>}, {pipeline_mode = #tpu.pipeline_mode<synchronous>, transform_indices = @transform_15, window_bounds = array<i64: 8, 128>}]} {
    %c0_i32 = arith.constant 0 : i32
    %0 = arith.cmpi eq, %arg0, %c0_i32 : i32
    %1 = arith.extui %0 : i1 to i32
    %c0_i32_0 = arith.constant 0 : i32
    %2 = arith.cmpi ne, %1, %c0_i32_0 : i32
    scf.if %2 {
      %cst_74 = arith.constant 0.000000e+00 : f32
      %172 = vector.broadcast %cst_74 : f32 to vector<8x128xf32>
      %c0_75 = arith.constant 0 : index
      %c0_76 = arith.constant 0 : index
      %173 = vector.load %arg15[%c0_75, %c0_76] : memref<8x128xf32, #tpu.memory_space<vmem>>, vector<8x128xf32>
      tpu.vector_store %arg15[%c0_75, %c0_76], %172 {strides = array<i32>} : memref<8x128xf32, #tpu.memory_space<vmem>>, vector<8x128xf32>,
      %cst_77 = arith.constant 0.000000e+00 : f32
      %174 = vector.broadcast %cst_77 : f32 to vector<8x128xf32>
      %c0_78 = arith.constant 0 : index
      %c0_79 = arith.constant 0 : index
      %175 = vector.load %arg16[%c0_78, %c0_79] : memref<8x128xf32, #tpu.memory_space<vmem>>, vector<8x128xf32>
      tpu.vector_store %arg16[%c0_78, %c0_79], %174 {strides = array<i32>} : memref<8x128xf32, #tpu.memory_space<vmem>>, vector<8x128xf32>,
    } else {
    }
    %3 = tpu.iota {dimensions = array<i32: 0>} : vector<8x1xi32>
    %c8_i32 = arith.constant 8 : i32
    %4 = arith.muli %arg0, %c8_i32 : i32
    %5 = vector.broadcast %4 : i32 to vector<8x1xi32>
    %6 = arith.addi %3, %5 : vector<8x1xi32>
    %c8_i32_1 = arith.constant 8 : i32
    %7 = vector.broadcast %c8_i32_1 : i32 to vector<8x1xi32>
    %8 = arith.cmpi slt, %6, %7 : vector<8x1xi32>
    %c0 = arith.constant 0 : index
    %c0_2 = arith.constant 0 : index
    %9 = vector.load %arg2[%c0, %c0_2] : memref<8x2xf32, #tpu.memory_space<vmem>>, vector<8x2xf32>
    %c0_3 = arith.constant 0 : index
    %c0_4 = arith.constant 0 : index
    %10 = vector.load %arg1[%c0_3, %c0_4] : memref<8x1xi32, #tpu.memory_space<vmem>>, vector<8x1xi32>
    %11 = tpu.iota {dimensions = array<i32: 1>} : vector<8x2xi32>
    %12 = vector.broadcast %10 : vector<8x1xi32> to vector<8x2xi32>
    %13 = arith.cmpi eq, %11, %12 : vector<8x2xi32>
    %cst = arith.constant 0.000000e+00 : f32
    %14 = vector.broadcast %cst : f32 to vector<8x2xf32>
    %15 = arith.select %13, %9, %14 : vector<8x2xi1>, vector<8x2xf32>
    %cst_5 = arith.constant dense<0.000000e+00> : vector<8xf32>
    %16 = vector.multi_reduction <add>, %15, %cst_5 [1] : vector<8x2xf32> to vector<8xf32>
    %17 = vector.shape_cast %16 : vector<8xf32> to vector<8x1xf32>
    %cst_6 = arith.constant dense<0xFF800000> : vector<8xf32>
    %18 = vector.multi_reduction <maximumf>, %9, %cst_6 [1] : vector<8x2xf32> to vector<8xf32>
    %19 = vector.shape_cast %18 : vector<8xf32> to vector<8x1xf32>
    %20 = vector.broadcast %19 : vector<8x1xf32> to vector<8x2xf32>
    %21 = arith.subf %9, %20 : vector<8x2xf32>
    %22 = math.exp %21 : vector<8x2xf32>
    %cst_7 = arith.constant dense<0.000000e+00> : vector<8xf32>
    %23 = vector.multi_reduction <add>, %22, %cst_7 [1] : vector<8x2xf32> to vector<8xf32>
    %24 = vector.shape_cast %23 : vector<8xf32> to vector<8x1xf32>
    %25 = math.log %24 : vector<8x1xf32>
    %26 = arith.addf %19, %25 : vector<8x1xf32>
    %27 = arith.subf %26, %17 : vector<8x1xf32>
    %cst_8 = arith.constant 0.000000e+00 : f32
    %28 = vector.broadcast %cst_8 : f32 to vector<8x1xf32>
    %29 = arith.select %8, %27, %28 : vector<8x1xi1>, vector<8x1xf32>
    %30 = vector.shape_cast %29 : vector<8x1xf32> to vector<1x8x1xf32>
    %cst_9 = arith.constant dense<0.000000e+00> : vector<1xf32>
    %31 = vector.multi_reduction <add>, %30, %cst_9 [1, 2] : vector<1x8x1xf32> to vector<1xf32>
    %32 = vector.shape_cast %31 : vector<1xf32> to vector<1x1x1xf32>
    %33 = vector.extract %32[0, 0, 0] : f32 from vector<1x1x1xf32>
    %c0_10 = arith.constant 0 : index
    %c0_11 = arith.constant 0 : index
    %34 = vector.load %arg7[%c0_10, %c0_11] : memref<8x128xf32, #tpu.memory_space<vmem>>, vector<8x128xf32>
    %c0_12 = arith.constant 0 : index
    %c0_13 = arith.constant 0 : index
    %35 = vector.load %arg8[%c0_12, %c0_13] : memref<8x128xf32, #tpu.memory_space<vmem>>, vector<8x128xf32>
    %c0_14 = arith.constant 0 : index
    %c0_15 = arith.constant 0 : index
    %36 = vector.load %arg9[%c0_14, %c0_15] : memref<8x128xf32, #tpu.memory_space<vmem>>, vector<8x128xf32>
    %c0_16 = arith.constant 0 : index
    %c0_17 = arith.constant 0 : index
    %37 = vector.load %arg10[%c0_16, %c0_17] : memref<8x128xf32, #tpu.memory_space<vmem>>, vector<8x128xf32>
    %38 = arith.subf %35, %34 : vector<8x128xf32>
    %cst_18 = arith.constant 1.000000e+00 : f32
    %39 = vector.broadcast %cst_18 : f32 to vector<8x128xf32>
    %40 = arith.subf %38, %39 : vector<8x128xf32>
    %41 = math.exp %34 : vector<8x128xf32>
    %42 = arith.subf %36, %37 : vector<8x128xf32>
    %43 = arith.mulf %42, %42 : vector<8x128xf32>
    %44 = arith.addf %41, %43 : vector<8x128xf32>
    %cst_19 = arith.constant 0.000000e+00 : f32
    %45 = vector.broadcast %cst_19 : f32 to vector<8x128xf32>
    %46 = arith.subf %45, %35 : vector<8x128xf32>
    %47 = math.exp %46 : vector<8x128xf32>
    %48 = arith.mulf %44, %47 : vector<8x128xf32>
    %49 = arith.addf %40, %48 : vector<8x128xf32>
    %cst_20 = arith.constant dense<0.000000e+00> : vector<128xf32>
    %50 = vector.multi_reduction <add>, %49, %cst_20 [0] : vector<8x128xf32> to vector<128xf32>
    %51 = vector.shape_cast %50 : vector<128xf32> to vector<1x128xf32>
    %c0_21 = arith.constant 0 : index
    %c0_22 = arith.constant 0 : index
    %52 = vector.load %arg11[%c0_21, %c0_22] : memref<8x128xf32, #tpu.memory_space<vmem>>, vector<8x128xf32>
    %c0_23 = arith.constant 0 : index
    %c0_24 = arith.constant 0 : index
    %53 = vector.load %arg12[%c0_23, %c0_24] : memref<8x128xf32, #tpu.memory_space<vmem>>, vector<8x128xf32>
    %54 = arith.subf %53, %52 : vector<8x128xf32>
    %cst_25 = arith.constant 1.000000e+00 : f32
    %55 = vector.broadcast %cst_25 : f32 to vector<8x128xf32>
    %56 = arith.subf %54, %55 : vector<8x128xf32>
    %57 = math.exp %52 : vector<8x128xf32>
    %cst_26 = arith.constant 0.000000e+00 : f32
    %58 = vector.broadcast %cst_26 : f32 to vector<8x128xf32>
    %59 = arith.subf %58, %53 : vector<8x128xf32>
    %60 = math.exp %59 : vector<8x128xf32>
    %61 = arith.mulf %57, %60 : vector<8x128xf32>
    %62 = arith.addf %56, %61 : vector<8x128xf32>
    %cst_27 = arith.constant dense<0.000000e+00> : vector<128xf32>
    %63 = vector.multi_reduction <add>, %62, %cst_27 [0] : vector<8x128xf32> to vector<128xf32>
    %64 = vector.shape_cast %63 : vector<128xf32> to vector<1x128xf32>
    %c0_28 = arith.constant 0 : index
    %c0_29 = arith.constant 0 : index
    %65 = vector.load %arg13[%c0_28, %c0_29] : memref<8x128xf32, #tpu.memory_space<vmem>>, vector<8x128xf32>
    %c0_30 = arith.constant 0 : index
    %c0_31 = arith.constant 0 : index
    %66 = vector.load %arg14[%c0_30, %c0_31] : memref<8x128xf32, #tpu.memory_space<vmem>>, vector<8x128xf32>
    %cst_32 = arith.constant 0.000000e+00 : f32
    %67 = vector.broadcast %cst_32 : f32 to vector<8x128xf32>
    %68 = arith.maximumf %65, %67 : vector<8x128xf32>
    %69 = arith.mulf %65, %66 : vector<8x128xf32>
    %70 = arith.subf %68, %69 : vector<8x128xf32>
    %71 = math.absf %65 : vector<8x128xf32>
    %cst_33 = arith.constant 0.000000e+00 : f32
    %72 = vector.broadcast %cst_33 : f32 to vector<8x128xf32>
    %73 = arith.subf %72, %71 : vector<8x128xf32>
    %74 = math.exp %73 : vector<8x128xf32>
    %75 = math.log1p %74 : vector<8x128xf32>
    %76 = arith.addf %70, %75 : vector<8x128xf32>
    %cst_34 = arith.constant dense<0.000000e+00> : vector<128xf32>
    %77 = vector.multi_reduction <add>, %76, %cst_34 [0] : vector<8x128xf32> to vector<128xf32>
    %78 = vector.shape_cast %77 : vector<128xf32> to vector<1x128xf32>
    %c0_35 = arith.constant 0 : index
    %c0_36 = arith.constant 0 : index
    %79 = vector.load %arg4[%c0_35, %c0_36] : memref<8x8xf32, #tpu.memory_space<vmem>>, vector<8x8xf32>
    %c0_37 = arith.constant 0 : index
    %c0_38 = arith.constant 0 : index
    %80 = vector.load %arg5[%c0_37, %c0_38] : memref<8x128xf32, #tpu.memory_space<vmem>>, vector<8x128xf32>
    %cst_39 = arith.constant dense<0.000000e+00> : vector<8x128xf32>
    %81 = tpu.matmul %79, %80, %cst_39 {dimension_numbers = #tpu.dot_dimension_numbers<[1], [0], [0], [1], [0, 0, 1, 1], [], []>} : vector<8x8xf32>, vector<8x128xf32>, vector<8x128xf32> -> vector<8x128xf32>
    %c0_40 = arith.constant 0 : index
    %c0_41 = arith.constant 0 : index
    %82 = vector.load %arg6[%c0_40, %c0_41] : memref<1x128xf32, #tpu.memory_space<vmem>>, vector<1x128xf32>
    %83 = vector.broadcast %82 : vector<1x128xf32> to vector<8x128xf32>
    %84 = arith.addf %81, %83 : vector<8x128xf32>
    %85 = math.cos %84 : vector<8x128xf32>
    %c0_42 = arith.constant 0 : index
    %c0_43 = arith.constant 0 : index
    %86 = vector.load %arg3[%c0_42, %c0_43] : memref<8x1xf32, #tpu.memory_space<vmem>>, vector<8x1xf32>
    %cst_44 = arith.constant 1.000000e+00 : f32
    %87 = vector.broadcast %cst_44 : f32 to vector<8x1xf32>
    %88 = arith.cmpf oeq, %86, %87 : vector<8x1xf32>
    %89 = arith.extui %88 : vector<8x1xi1> to vector<8x1xi32>
    %90 = arith.sitofp %89 : vector<8x1xi32> to vector<8x1xf32>
    %cst_45 = arith.constant 0.000000e+00 : f32
    %91 = vector.broadcast %cst_45 : f32 to vector<8x1xf32>
    %92 = arith.select %8, %90, %91 : vector<8x1xi1>, vector<8x1xf32>
    %cst_46 = arith.constant 0.000000e+00 : f32
    %93 = vector.broadcast %cst_46 : f32 to vector<8x1xf32>
    %94 = arith.cmpf oeq, %86, %93 : vector<8x1xf32>
    %95 = arith.extui %94 : vector<8x1xi1> to vector<8x1xi32>
    %96 = arith.sitofp %95 : vector<8x1xi32> to vector<8x1xf32>
    %cst_47 = arith.constant 0.000000e+00 : f32
    %97 = vector.broadcast %cst_47 : f32 to vector<8x1xf32>
    %98 = arith.select %8, %96, %97 : vector<8x1xi1>, vector<8x1xf32>
    %99 = tpu.iota {dimensions = array<i32: 1>} : vector<8x8xi32>
    %c0_i32_48 = arith.constant 0 : i32
    %100 = vector.broadcast %c0_i32_48 : i32 to vector<8x8xi32>
    %101 = arith.cmpi eq, %99, %100 : vector<8x8xi32>
    %cst_49 = arith.constant 0.000000e+00 : f32
    %102 = vector.shape_cast %92 : vector<8x1xf32> to vector<8x1xf32>
    %103 = vector.broadcast %102 : vector<8x1xf32> to vector<8x8xf32>
    %104 = vector.broadcast %cst_49 : f32 to vector<8x8xf32>
    %105 = arith.select %101, %103, %104 : vector<8x8xi1>, vector<8x8xf32>
    %c1_i32 = arith.constant 1 : i32
    %106 = vector.broadcast %c1_i32 : i32 to vector<8x8xi32>
    %107 = arith.cmpi eq, %99, %106 : vector<8x8xi32>
    %cst_50 = arith.constant 0.000000e+00 : f32
    %108 = vector.shape_cast %98 : vector<8x1xf32> to vector<8x1xf32>
    %109 = vector.broadcast %108 : vector<8x1xf32> to vector<8x8xf32>
    %110 = vector.broadcast %cst_50 : f32 to vector<8x8xf32>
    %111 = arith.select %107, %109, %110 : vector<8x8xi1>, vector<8x8xf32>
    %112 = arith.addf %105, %111 : vector<8x8xf32>
    %cst_51 = arith.constant dense<0.000000e+00> : vector<8x128xf32>
    %113 = tpu.matmul %112, %85, %cst_51 {dimension_numbers = #tpu.dot_dimension_numbers<[0], [0], [1], [1], [0, 1, 1, 1], [], []>} : vector<8x8xf32>, vector<8x128xf32>, vector<8x128xf32> -> vector<8x128xf32>
    %114 = vector.shape_cast %92 : vector<8x1xf32> to vector<1x8x1xf32>
    %cst_52 = arith.constant dense<0.000000e+00> : vector<1xf32>
    %115 = vector.multi_reduction <add>, %114, %cst_52 [1, 2] : vector<1x8x1xf32> to vector<1xf32>
    %116 = vector.shape_cast %115 : vector<1xf32> to vector<1x1x1xf32>
    %117 = vector.extract %116[0, 0, 0] : f32 from vector<1x1x1xf32>
    %118 = vector.shape_cast %98 : vector<8x1xf32> to vector<1x8x1xf32>
    %cst_53 = arith.constant dense<0.000000e+00> : vector<1xf32>
    %119 = vector.multi_reduction <add>, %118, %cst_53 [1, 2] : vector<1x8x1xf32> to vector<1xf32>
    %120 = vector.shape_cast %119 : vector<1xf32> to vector<1x1x1xf32>
    %121 = vector.extract %120[0, 0, 0] : f32 from vector<1x1x1xf32>
    %c0_54 = arith.constant 0 : index
    %c0_55 = arith.constant 0 : index
    %122 = vector.load %arg15[%c0_54, %c0_55] : memref<8x128xf32, #tpu.memory_space<vmem>>, vector<8x128xf32>
    %123 = arith.addf %122, %113 : vector<8x128xf32>
    %c0_56 = arith.constant 0 : index
    %c0_57 = arith.constant 0 : index
    %124 = vector.load %arg15[%c0_56, %c0_57] : memref<8x128xf32, #tpu.memory_space<vmem>>, vector<8x128xf32>
    tpu.vector_store %arg15[%c0_56, %c0_57], %123 {strides = array<i32>} : memref<8x128xf32, #tpu.memory_space<vmem>>, vector<8x128xf32>,
    %125 = tpu.iota {dimensions = array<i32: 0>} : vector<8x128xi32>
    %126 = tpu.iota {dimensions = array<i32: 1>} : vector<8x128xi32>
    %c0_i32_58 = arith.constant 0 : i32
    %127 = vector.broadcast %c0_i32_58 : i32 to vector<8x128xi32>
    %128 = arith.cmpi eq, %126, %127 : vector<8x128xi32>
    %cst_59 = arith.constant 0.000000e+00 : f32
    %129 = vector.broadcast %33 : f32 to vector<8x128xf32>
    %130 = vector.broadcast %cst_59 : f32 to vector<8x128xf32>
    %131 = arith.select %128, %129, %130 : vector<8x128xi1>, vector<8x128xf32>
    %c1_i32_60 = arith.constant 1 : i32
    %132 = vector.broadcast %c1_i32_60 : i32 to vector<8x128xi32>
    %133 = arith.cmpi eq, %126, %132 : vector<8x128xi32>
    %cst_61 = arith.constant 0.000000e+00 : f32
    %134 = vector.broadcast %117 : f32 to vector<8x128xf32>
    %135 = vector.broadcast %cst_61 : f32 to vector<8x128xf32>
    %136 = arith.select %133, %134, %135 : vector<8x128xi1>, vector<8x128xf32>
    %137 = arith.addf %131, %136 : vector<8x128xf32>
    %c2_i32 = arith.constant 2 : i32
    %138 = vector.broadcast %c2_i32 : i32 to vector<8x128xi32>
    %139 = arith.cmpi eq, %126, %138 : vector<8x128xi32>
    %cst_62 = arith.constant 0.000000e+00 : f32
    %140 = vector.broadcast %121 : f32 to vector<8x128xf32>
    %141 = vector.broadcast %cst_62 : f32 to vector<8x128xf32>
    %142 = arith.select %139, %140, %141 : vector<8x128xi1>, vector<8x128xf32>
    %143 = arith.addf %137, %142 : vector<8x128xf32>
    %c0_63 = arith.constant 0 : index
    %c0_64 = arith.constant 0 : index
    %144 = vector.load %arg16[%c0_63, %c0_64] : memref<8x128xf32, #tpu.memory_space<vmem>>, vector<8x128xf32>
    %c0_i32_65 = arith.constant 0 : i32
    %145 = vector.broadcast %c0_i32_65 : i32 to vector<8x128xi32>
    %146 = arith.cmpi eq, %125, %145 : vector<8x128xi32>
    %cst_66 = arith.constant 0.000000e+00 : f32
    %147 = vector.shape_cast %51 : vector<1x128xf32> to vector<1x128xf32>
    %148 = vector.broadcast %147 : vector<1x128xf32> to vector<8x128xf32>
    %149 = vector.broadcast %cst_66 : f32 to vector<8x128xf32>
    %150 = arith.select %146, %148, %149 : vector<8x128xi1>, vector<8x128xf32>
    %c1_i32_67 = arith.constant 1 : i32
    %151 = vector.broadcast %c1_i32_67 : i32 to vector<8x128xi32>
    %152 = arith.cmpi eq, %125, %151 : vector<8x128xi32>
    %cst_68 = arith.constant 0.000000e+00 : f32
    %153 = vector.shape_cast %64 : vector<1x128xf32> to vector<1x128xf32>
    %154 = vector.broadcast %153 : vector<1x128xf32> to vector<8x128xf32>
    %155 = vector.broadcast %cst_68 : f32 to vector<8x128xf32>
    %156 = arith.select %152, %154, %155 : vector<8x128xi1>, vector<8x128xf32>
    %157 = arith.addf %150, %156 : vector<8x128xf32>
    %c2_i32_69 = arith.constant 2 : i32
    %158 = vector.broadcast %c2_i32_69 : i32 to vector<8x128xi32>
    %159 = arith.cmpi eq, %125, %158 : vector<8x128xi32>
    %cst_70 = arith.constant 0.000000e+00 : f32
    %160 = vector.shape_cast %78 : vector<1x128xf32> to vector<1x128xf32>
    %161 = vector.broadcast %160 : vector<1x128xf32> to vector<8x128xf32>
    %162 = vector.broadcast %cst_70 : f32 to vector<8x128xf32>
    %163 = arith.select %159, %161, %162 : vector<8x128xi1>, vector<8x128xf32>
    %164 = arith.addf %157, %163 : vector<8x128xf32>
    %c3_i32 = arith.constant 3 : i32
    %165 = vector.broadcast %c3_i32 : i32 to vector<8x128xi32>
    %166 = arith.cmpi eq, %125, %165 : vector<8x128xi32>
    %cst_71 = arith.constant 0.000000e+00 : f32
    %167 = vector.broadcast %cst_71 : f32 to vector<8x128xf32>
    %168 = arith.select %166, %143, %167 : vector<8x128xi1>, vector<8x128xf32>
    %169 = arith.addf %164, %168 : vector<8x128xf32>
    %170 = arith.addf %144, %169 : vector<8x128xf32>
    %c0_72 = arith.constant 0 : index
    %c0_73 = arith.constant 0 : index
    %171 = vector.load %arg16[%c0_72, %c0_73] : memref<8x128xf32, #tpu.memory_space<vmem>>, vector<8x128xf32>
    tpu.vector_store %arg16[%c0_72, %c0_73], %170 {strides = array<i32>} : memref<8x128xf32, #tpu.memory_space<vmem>>, vector<8x128xf32>,
    return
  }
  func.func @transform_0(%arg0: i32) -> (i32, i32) {
    %c0_i32 = arith.constant 0 : i32
    %c0_i32_0 = arith.constant 0 : i32
    return %arg0, %c0_i32 : i32, i32
  }
  func.func @transform_1(%arg0: i32) -> (i32, i32) {
    %c0_i32 = arith.constant 0 : i32
    %c0_i32_0 = arith.constant 0 : i32
    return %arg0, %c0_i32 : i32, i32
  }
  func.func @transform_2(%arg0: i32) -> (i32, i32) {
    %c0_i32 = arith.constant 0 : i32
    %c0_i32_0 = arith.constant 0 : i32
    return %arg0, %c0_i32 : i32, i32
  }
  func.func @transform_3(%arg0: i32) -> (i32, i32) {
    %c0_i32 = arith.constant 0 : i32
    %c0_i32_0 = arith.constant 0 : i32
    return %arg0, %c0_i32 : i32, i32
  }
  func.func @transform_4(%arg0: i32) -> (i32, i32) {
    %c0_i32 = arith.constant 0 : i32
    %c0_i32_0 = arith.constant 0 : i32
    %c0_i32_1 = arith.constant 0 : i32
    return %c0_i32, %c0_i32_0 : i32, i32
  }
  func.func @transform_5(%arg0: i32) -> (i32, i32) {
    %c0_i32 = arith.constant 0 : i32
    %c0_i32_0 = arith.constant 0 : i32
    %c0_i32_1 = arith.constant 0 : i32
    return %c0_i32, %c0_i32_0 : i32, i32
  }
  func.func @transform_6(%arg0: i32) -> (i32, i32) {
    %c0_i32 = arith.constant 0 : i32
    %c0_i32_0 = arith.constant 0 : i32
    return %arg0, %c0_i32 : i32, i32
  }
  func.func @transform_7(%arg0: i32) -> (i32, i32) {
    %c0_i32 = arith.constant 0 : i32
    %c0_i32_0 = arith.constant 0 : i32
    return %arg0, %c0_i32 : i32, i32
  }
  func.func @transform_8(%arg0: i32) -> (i32, i32) {
    %c0_i32 = arith.constant 0 : i32
    %c0_i32_0 = arith.constant 0 : i32
    return %arg0, %c0_i32 : i32, i32
  }
  func.func @transform_9(%arg0: i32) -> (i32, i32) {
    %c0_i32 = arith.constant 0 : i32
    %c0_i32_0 = arith.constant 0 : i32
    return %arg0, %c0_i32 : i32, i32
  }
  func.func @transform_10(%arg0: i32) -> (i32, i32) {
    %c0_i32 = arith.constant 0 : i32
    %c0_i32_0 = arith.constant 0 : i32
    return %arg0, %c0_i32 : i32, i32
  }
  func.func @transform_11(%arg0: i32) -> (i32, i32) {
    %c0_i32 = arith.constant 0 : i32
    %c0_i32_0 = arith.constant 0 : i32
    return %arg0, %c0_i32 : i32, i32
  }
  func.func @transform_12(%arg0: i32) -> (i32, i32) {
    %c0_i32 = arith.constant 0 : i32
    %c0_i32_0 = arith.constant 0 : i32
    return %arg0, %c0_i32 : i32, i32
  }
  func.func @transform_13(%arg0: i32) -> (i32, i32) {
    %c0_i32 = arith.constant 0 : i32
    %c0_i32_0 = arith.constant 0 : i32
    return %arg0, %c0_i32 : i32, i32
  }
  func.func @transform_14(%arg0: i32) -> (i32, i32) {
    %c0_i32 = arith.constant 0 : i32
    %c0_i32_0 = arith.constant 0 : i32
    %c0_i32_1 = arith.constant 0 : i32
    return %c0_i32, %c0_i32_0 : i32, i32
  }
  func.func @transform_15(%arg0: i32) -> (i32, i32) {
    %c0_i32 = arith.constant 0 : i32
    %c0_i32_0 = arith.constant 0 : i32
    %c0_i32_1 = arith.constant 0 : i32
    return %c0_i32, %c0_i32_0 : i32, i32
  }
}

</mosaic_0001>

<llo_original>
// kernel: run.1
$region0: #{run.1}
  #allocation0 [shape = 'u32[]', space=smem, size = 0x4, offset = 0x4, fixed_abs, tag = 'smem constant byte address 0x4 - core index']
  #allocation1 [shape = 'u32[144,128]{1,0:T(1,128)}', space=vmem, size = 0x12000, scoped, tag = 'internal scratch']
  %s0 = inlined_call_operand.vmem [shape: s32[8,1], index: 0, kind: input, shape index: {}]
  %s1 = inlined_call_operand.vmem [shape: f32[8,2], index: 1, kind: input, shape index: {}]
  %s2 = inlined_call_operand.vmem [shape: f32[8,1], index: 2, kind: input, shape index: {}]
  %s3 = inlined_call_operand.vmem [shape: f32[8,8], index: 3, kind: input, shape index: {}]
  %s4 = inlined_call_operand.vmem [shape: f32[8,128], index: 4, kind: input, shape index: {}]
  %s5 = inlined_call_operand.vmem [shape: f32[1,128], index: 5, kind: input, shape index: {}]
  %s6 = inlined_call_operand.vmem [shape: f32[8,128], index: 6, kind: input, shape index: {}]
  %s7 = inlined_call_operand.vmem [shape: f32[8,128], index: 7, kind: input, shape index: {}]
  %s8 = inlined_call_operand.vmem [shape: f32[8,128], index: 8, kind: input, shape index: {}]
  %s9 = inlined_call_operand.vmem [shape: f32[8,128], index: 9, kind: input, shape index: {}]
  %s10 = inlined_call_operand.vmem [shape: f32[8,128], index: 10, kind: input, shape index: {}]
  %s11 = inlined_call_operand.vmem [shape: f32[8,128], index: 11, kind: input, shape index: {}]
  %s12 = inlined_call_operand.vmem [shape: f32[8,128], index: 12, kind: input, shape index: {}]
  %s13 = inlined_call_operand.vmem [shape: f32[8,128], index: 13, kind: input, shape index: {}]
  %s14 = inlined_call_operand.vmem [shape: f32[8,128], index: 14, kind: output, shape index: {0}]
  %s15 = inlined_call_operand.vmem [shape: f32[8,128], index: 15, kind: output, shape index: {1}]
  %16 = xla_tuple %s14, %s15
  %s17 = sld [smem:[#allocation0]]
  $region78: #{run.1} parent=0
    _
  %s19 = ssub.s32 1, %s17
  %s20 = scalar_select 0, %s19, %s17
  // Predicated region
  $region2: #{run.1} parent=0 // pred_check
    _
  $region3: #{run.1} parent=0 // pred_check_branch
    %22 = sbr.rel (0) target = $region5
  $region4: #{run.1} parent=0 // pred_region
    _
  $region5: #{run.1} parent=0 // pred_fallthru
    _
  // Predicated region
  $region6: #{run.1} parent=0 // pred_check
    _
  $region7: #{run.1} parent=0 // pred_check_branch
    %24 = sbr.rel (0) target = $region9
  $region8: #{run.1} parent=0 // pred_region
    _
  $region9: #{run.1} parent=0 // pred_fallthru
    _
  // Predicated region
  $region10: #{run.1} parent=0 // pred_check
    _
  $region11: #{run.1} parent=0 // pred_check_branch
    %26 = sbr.rel (0) target = $region13
  $region12: #{run.1} parent=0 // pred_region
    _
  $region13: #{run.1} parent=0 // pred_fallthru
    _
  // Predicated region
  $region14: #{run.1} parent=0 // pred_check
    _
  $region15: #{run.1} parent=0 // pred_check_branch
    %28 = sbr.rel (0) target = $region17
  $region16: #{run.1} parent=0 // pred_region
    _
  $region17: #{run.1} parent=0 // pred_fallthru
    _
  // Predicated region
  $region18: #{run.1} parent=0 // pred_check
    _
  $region19: #{run.1} parent=0 // pred_check_branch
    %30 = sbr.rel (0) target = $region21
  $region20: #{run.1} parent=0 // pred_region
    _
  $region21: #{run.1} parent=0 // pred_fallthru
    _
  // Predicated region
  $region22: #{run.1} parent=0 // pred_check
    _
  $region23: #{run.1} parent=0 // pred_check_branch
    %32 = sbr.rel (0) target = $region25
  $region24: #{run.1} parent=0 // pred_region
    _
  $region25: #{run.1} parent=0 // pred_fallthru
    _
  // Predicated region
  $region26: #{run.1} parent=0 // pred_check
    _
  $region27: #{run.1} parent=0 // pred_check_branch
    %34 = sbr.rel (0) target = $region29
  $region28: #{run.1} parent=0 // pred_region
    _
  $region29: #{run.1} parent=0 // pred_fallthru
    _
  // Predicated region
  $region30: #{run.1} parent=0 // pred_check
    _
  $region31: #{run.1} parent=0 // pred_check_branch
    %36 = sbr.rel (0) target = $region33
  $region32: #{run.1} parent=0 // pred_region
    _
  $region33: #{run.1} parent=0 // pred_fallthru
    _
  // Predicated region
  $region34: #{run.1} parent=0 // pred_check
    _
  $region35: #{run.1} parent=0 // pred_check_branch
    %38 = sbr.rel (0) target = $region37
  $region36: #{run.1} parent=0 // pred_region
    _
  $region37: #{run.1} parent=0 // pred_fallthru
    _
  // Predicated region
  $region38: #{run.1} parent=0 // pred_check
    _
  $region39: #{run.1} parent=0 // pred_check_branch
    %40 = sbr.rel (0) target = $region41
  $region40: #{run.1} parent=0 // pred_region
    _
  $region41: #{run.1} parent=0 // pred_fallthru
    _
  // Predicated region
  $region42: #{run.1} parent=0 // pred_check
    _
  $region43: #{run.1} parent=0 // pred_check_branch
    %42 = sbr.rel (0) target = $region45
  $region44: #{run.1} parent=0 // pred_region
    _
  $region45: #{run.1} parent=0 // pred_fallthru
    _
  // Predicated region
  $region46: #{run.1} parent=0 // pred_check
    _
  $region47: #{run.1} parent=0 // pred_check_branch
    %44 = sbr.rel (0) target = $region49
  $region48: #{run.1} parent=0 // pred_region
    _
  $region49: #{run.1} parent=0 // pred_fallthru
    _
  // Predicated region
  $region50: #{run.1} parent=0 // pred_check
    _
  $region51: #{run.1} parent=0 // pred_check_branch
    %46 = sbr.rel (0) target = $region53
  $region52: #{run.1} parent=0 // pred_region
    _
  $region53: #{run.1} parent=0 // pred_fallthru
    _
  // Predicated region
  $region54: #{run.1} parent=0 // pred_check
    _
  $region55: #{run.1} parent=0 // pred_check_branch
    %48 = sbr.rel (0) target = $region57
  $region56: #{run.1} parent=0 // pred_region
    _
  $region57: #{run.1} parent=0 // pred_fallthru
    _
  %p49 = scmp.eq.s32.totalorder 0, 0
  // Predicated region
  $region58: #{run.1} parent=0 // pred_check
    %p50 = pneg %p49
  $region59: #{run.1} parent=0 // pred_check_branch
    %52 = sbr.rel (%p50) target = $region61
  $region60: #{run.1} parent=0 // pred_region
    %53 = vst [vmem:[%s14] sm:$0xff] 0.0
    %54 = vst [vmem:[%s15] sm:$0xff] 0.0
  $region61: #{run.1} parent=0 // pred_fallthru
    _
  %v55 = vlaneseq
  %v56 = vshrl.u32 %v55, 7
  %s57 = smul.u32 0, 8
  %v58 = vstv %s57
  %v59 = vadd.s32 %v56, %v58
  %vm60 = vcmp.lt.s32.totalorder %v59, 8
  %v61 = vld [vmem:[%s1] sm:$0xff]
  %v62 = vld [vmem:[%s0] sm:$0xff]
  %v63 = vlaneseq
  %v64 = vand.u32 %v63, 127
  %65 = vset.pattern.permute.xlu0 0
  %66 = vperm.xlu0 %65, %v62
  %v67 = vpop.permute.xlu0 %66
  %vm68 = vcmp.eq.s32.totalorder %v64, %v67
  %v69 = vsel %vm68, %v61, 0.0
  %vm70 = vcmask 15360
  %v71 = vsel %vm70, %v69, 0.0
  %72 = vadd.xlane.f32.xlu0 %v71
  %v73 = vpop.xlane.xlu0 %72
  %v74 = vsel %vm70, %v61, -inf
  %75 = vmax.xlane.f32.xlu0 %v74
  %v76 = vpop.xlane.xlu0 %75
  %v77 = vsub.f32 %v61, %v76
  %v78 = vmul.f32 %v77, 1.442695
  %v79 = vpow.pop %v78
  %v80 = vsel %vm70, %v79, 0.0
  %81 = vadd.xlane.f32.xlu0 %v80
  %v82 = vpop.xlane.xlu0 %81
  %v83 = vlog2.pop %v82
  %v84 = vmul.f32 %v83, 0.6931472
  %v85 = vadd.f32 %v76, %v84
  %v86 = vsub.f32 %v85, %v73
  %v87 = vsel %vm60, %v86, 0.0
  %vm88 = vcmask 7168
  %v89 = vsel %vm88, %v87, 0.0
  %90 = vadd.xlane.f32.xlu0 %v89
  %v91 = vpop.xlane.xlu0 %90
  %v92 = vrot.slane %v91, 4
  %v93 = vadd.f32 %v91, %v92
  %v94 = vrot.slane %v93, 2
  %v95 = vadd.f32 %v93, %v94
  %v96 = vrot.slane %v95, 1
  %v97 = vadd.f32 %v95, %v96
  %s98 = vtos %v97
  %v99 = vld [vmem:[%s6] sm:$0xff]
  %v100 = vld [vmem:[%s7] sm:$0xff]
  %v101 = vld [vmem:[%s8] sm:$0xff]
  %v102 = vld [vmem:[%s9] sm:$0xff]
  %v103 = vsub.f32 %v100, %v99
  %v104 = vsub.f32 %v103, 1.0
  %v105 = vmul.f32 %v99, 1.442695
  %v106 = vpow.pop %v105
  %v107 = vsub.f32 %v101, %v102
  %v108 = vmul.f32 %v107, %v107
  %v109 = vadd.f32 %v106, %v108
  %v110 = vsub.f32 0.0, %v100
  %v111 = vmul.f32 %v110, 1.442695
  %v112 = vpow.pop %v111
  %v113 = vmul.f32 %v109, %v112
  %v114 = vadd.f32 %v104, %v113
  %v115 = vrot.slane %v114, 4
  %v116 = vadd.f32 %v114, %v115
  %v117 = vrot.slane %v116, 2
  %v118 = vadd.f32 %v116, %v117
  %v119 = vrot.slane %v118, 1
  %v120 = vadd.f32 %v118, %v119
  %v121 = vld [vmem:[%s10] sm:$0xff]
  %v122 = vld [vmem:[%s11] sm:$0xff]
  %v123 = vsub.f32 %v122, %v121
  %v124 = vsub.f32 %v123, 1.0
  %v125 = vmul.f32 %v121, 1.442695
  %v126 = vpow.pop %v125
  %v127 = vsub.f32 0.0, %v122
  %v128 = vmul.f32 %v127, 1.442695
  %v129 = vpow.pop %v128
  %v130 = vmul.f32 %v126, %v129
  %v131 = vadd.f32 %v124, %v130
  %v132 = vrot.slane %v131, 4
  %v133 = vadd.f32 %v131, %v132
  %v134 = vrot.slane %v133, 2
  %v135 = vadd.f32 %v133, %v134
  %v136 = vrot.slane %v135, 1
  %v137 = vadd.f32 %v135, %v136
  %v138 = vld [vmem:[%s12] sm:$0xff]
  %v139 = vld [vmem:[%s13] sm:$0xff]
  %v140 = vmax.f32 %v138, 0.0
  %v141 = vmul.f32 %v138, %v139
  %v142 = vsub.f32 %v140, %v141
  %v143 = vand.u32 2147483647, %v138
  %v144 = vsub.f32 0.0, %v143
  %v145 = vmul.f32 %v144, 1.442695
  %v146 = vpow.pop %v145
  %v147 = vadd.f32 %v146, 1.0
  %v148 = vlog2.pop %v147
  %v149 = vmul.f32 %v148, 0.6931472
  %v150 = vmul.f32 -0.5, %v146
  %v151 = vadd.f32 %v150, 1.0
  %v152 = vmul.f32 %v151, %v146
  %v153 = vand.u32 2147483647, %v146
  %vm154 = vcmp.lt.f32.partialorder %v153, 0.0004427343
  %v155 = vsel %vm154, %v152, %v149
  %v156 = vadd.f32 %v142, %v155
  %v157 = vrot.slane %v156, 4
  %v158 = vadd.f32 %v156, %v157
  %v159 = vrot.slane %v158, 2
  %v160 = vadd.f32 %v158, %v159
  %v161 = vrot.slane %v160, 1
  %v162 = vadd.f32 %v160, %v161
  %v163 = vld [vmem:[%s3] sm:$0xff]
  %v164 = vld [vmem:[%s4] sm:$0xff]
  %v165 = vld [vmem:[%s5] sm:$0x1]
  %v167 = vlaneseq
  %v168 = vshrl.u32 %v167, 7
  %v169 = vsub.s32 0, %v168
  %v170 = vrot.slane %v165, %v169
  %vm172 = vcmask 64512
  %v174 = vsel %vm172, %v163, 0
  %176 = vmatprep.subr.mxu0 0.0
  %177 = vmatpush1.msra.mxu0 0.0
  %178 = vmatprep.subr.mxu0 0.0
  %179 = vmatpush1.msra.mxu0 0.0
  %180 = vmatprep.subr.mxu0 0.0
  %181 = vmatpush1.msra.mxu0 0.0
  %182 = vmatprep.subr.mxu0 0.0
  %183 = vmatpush1.msra.mxu0 0.0
  %184 = vmatprep.subr.mxu0 0.0
  %185 = vmatpush1.msra.mxu0 0.0
  %186 = vmatprep.subr.mxu0 0.0
  %187 = vmatpush1.msra.mxu0 0.0
  %188 = vmatprep.subr.mxu0 0.0
  %189 = vmatpush1.msra.mxu0 0.0
  %190 = vmatprep.subr.mxu0 0.0
  %191 = vmatpush1.msra.mxu0 0.0
  %192 = vmatprep.subr.mxu0 0.0
  %193 = vmatpush1.msra.mxu0 0.0
  %194 = vmatprep.subr.mxu0 0.0
  %195 = vmatpush1.msra.mxu0 0.0
  %196 = vmatprep.subr.mxu0 0.0
  %197 = vmatpush1.msra.mxu0 0.0
  %198 = vmatprep.subr.mxu0 0.0
  %199 = vmatpush1.msra.mxu0 0.0
  %200 = vmatprep.subr.mxu0 0.0
  %201 = vmatpush1.msra.mxu0 0.0
  %202 = vmatprep.subr.mxu0 0.0
  %203 = vmatpush1.msra.mxu0 0.0
  %204 = vmatprep.subr.mxu0 0.0
  %205 = vmatpush1.msra.mxu0 0.0
  %206 = vmatprep.subr.mxu0 0.0
  %207 = vmatpush1.msra.mxu0 %v164
  %208 = vmatprep.subr.mxu0 0.0
  %209 = vmatpush2.msra.mxu0 0.0
  %210 = vmatprep.subr.mxu0 0.0
  %211 = vmatpush2.msra.mxu0 0.0
  %212 = vmatprep.subr.mxu0 0.0
  %213 = vmatpush2.msra.mxu0 0.0
  %214 = vmatprep.subr.mxu0 0.0
  %215 = vmatpush2.msra.mxu0 0.0
  %216 = vmatprep.subr.mxu0 0.0
  %217 = vmatpush2.msra.mxu0 0.0
  %218 = vmatprep.subr.mxu0 0.0
  %219 = vmatpush2.msra.mxu0 0.0
  %220 = vmatprep.subr.mxu0 0.0
  %221 = vmatpush2.msra.mxu0 0.0
  %222 = vmatprep.subr.mxu0 0.0
  %223 = vmatpush2.msra.mxu0 0.0
  %224 = vmatprep.subr.mxu0 0.0
  %225 = vmatpush2.msra.mxu0 0.0
  %226 = vmatprep.subr.mxu0 0.0
  %227 = vmatpush2.msra.mxu0 0.0
  %228 = vmatprep.subr.mxu0 0.0
  %229 = vmatpush2.msra.mxu0 0.0
  %230 = vmatprep.subr.mxu0 0.0
  %231 = vmatpush2.msra.mxu0 0.0
  %232 = vmatprep.subr.mxu0 0.0
  %233 = vmatpush2.msra.mxu0 0.0
  %234 = vmatprep.subr.mxu0 0.0
  %235 = vmatpush2.msra.mxu0 0.0
  %236 = vmatprep.subr.mxu0 0.0
  %237 = vmatpush2.msra.mxu0 0.0
  %238 = vmatprep.subr.mxu0 0.0
  %239 = vmatpush2.msra.mxu0 0.0
  %240 = vmatprep.mubr.f32.mxu0 0.0
  %241 = vmatmul.mubr.f32.gmra.mxu0 %v174
  %v242 = vpop.f32.mrf.mxu0
  %v243 = vadd.f32 %v170, %v242
  %v244 = vpop.f32.mrf.mxu0
  %245 = vdwg.mxu0
  %v246 = vand.u32 2147483647, %v243
  %vm247 = vcmp.le.f32.partialorder %v246, 0.7853982
  %vm248 = vcmp.lt.s32.totalorder %v243, 0
  %v249 = vand.u32 %v243, 2139095040
  %v250 = vshrl.u32 %v249, 23
  %v251 = vsub.s32 %v250, 127
  %v252 = vand.u32 2147483647, %v243
  %v253 = vand.u32 %v252, 8388607
  %v254 = vor.u32 %v253, 8388608
  %v255 = vsub.s32 0, %v254
  %v256 = vadd.s32 %v251, 1
  %vm257 = vcmp.gt.s32.totalorder %v256, 0
  %v258 = vsel %vm257, %v256, 0
  %v259 = vshrl.u32 %v258, 5
  %v260 = vand.u32 %v258, 31
  %v261 = vsub.s32 32, %v260
  %v262 = vshrl.u32 683565275, %v261
  %v263 = vshll.u32 683565275, %v260
  %v264 = vshrl.u32 2475754826, %v261
  %v265 = vor.u32 %v263, %v264
  %v266 = vshll.u32 2475754826, %v260
  %v267 = vshrl.u32 2131351028, %v261
  %v268 = vor.u32 %v266, %v267
  %v269 = vshll.u32 2131351028, %v260
  %v270 = vshrl.u32 2102212464, %v261
  %v271 = vor.u32 %v269, %v270
  %v272 = vshll.u32 2102212464, %v260
  %v273 = vshrl.u32 920167782, %v261
  %v274 = vor.u32 %v272, %v273
  %v275 = vshll.u32 920167782, %v260
  %v276 = vshrl.u32 1326507024, %v261
  %v277 = vor.u32 %v275, %v276
  %vm278 = vcmp.lt.s32.totalorder %v259, 1
  %vm279 = vcmp.lt.s32.totalorder %v259, 2
  %vm280 = vcmp.lt.s32.totalorder %v259, 3
  %vm281 = vcmp.lt.s32.totalorder %v259, 4
  %v282 = vsel %vm278, %v262, %v265
  %v283 = vsel %vm281, %v271, 2102212464
  %v284 = vsel %vm280, %v268, %v283
  %v285 = vsel %vm279, %v282, %v284
  %v286 = vsel %vm278, %v265, %v268
  %v287 = vsel %vm281, %v274, 920167782
  %v288 = vsel %vm280, %v271, %v287
  %v289 = vsel %vm279, %v286, %v288
  %v290 = vsel %vm278, %v268, %v271
  %v291 = vsel %vm281, %v277, 1326507024
  %v292 = vsel %vm280, %v274, %v291
  %v293 = vsel %vm279, %v290, %v292
  %v294 = vshll.u32 %v254, 8
  %v295 = vmul.u32.u64.compose %v294, %v293
  %v296 = vextract.low.u32 %v295
  %v297 = vextract.high.u32 %v295
  %v298 = vmul.u32.u64.compose %v294, %v289
  %v299 = vextract.low.u32 %v298
  %v300 = vextract.high.u32 %v298
  %v301 = vmul.u32 %v294, %v285
  %v302 = vadd.s32 %v297, %v299
  %vm303 = vc.u32 %v297, %v299
  %v304 = vadd.s32 %v300, 1
  %v305 = vsel %vm303, %v304, %v300
  %v306 = vadd.s32 %v301, %v305
  %v307 = vadd.s32 %v306, 536870912
  %v308 = vshrl.u32 %v307, 30
  %v309 = vshll.u32 %v308, 30
  %v310 = vsub.s32 %v306, %v309
  %vm311 = vcmp.lt.s32.totalorder %v310, 0
  %v312 = vsub.s32 0, %v310
  %v313 = vsel %vm311, %v312, %v310
  %v314 = vclz %v313
  %v315 = vsub.s32 %v314, 2
  %vm316 = vcmp.gt.s32.totalorder 0, %v315
  %v317 = vsel %vm316, 0, %v315
  %v318 = vsub.s32 32, %v317
  %v319 = vshll.u32 %v310, %v317
  %v320 = vshrl.u32 %v302, %v318
  %v321 = vor.u32 %v319, %v320
  %v322 = vsub.s32 4294967266, %v317
  %v323 = vadd.s32 %v322, 127
  %v324 = vshll.u32 %v323, 23
  %v325 = vor.u32 4788187, %v324
  %v326 = vand.u32 2147483647, %v325
  %v328 = vcvt.s32.f32 %v321
  %v329 = vmul.f32 %v328, %v326
  %v330 = vxor.u32 %v329, 2147483648
  %v331 = vsel %vm248, %v330, %v329
  %v332 = vsub.s32 4, %v308
  %v333 = vsel %vm248, %v332, %v308
  %v334 = vsel %vm247, %v243, %v331
  %v335 = vsel %vm247, 0, %v333
  %v336 = vcosq.f32.pop %v334
  %v337 = vsinq.f32.pop %v334
  %vm338 = vweird.f32 %v243
  %v339 = vand.u32 %v335, 3
  %vm340 = vcmp.lt.s32.totalorder %v339, 2
  %vm341 = vcmp.eq.s32.totalorder %v339, 0
  %v342 = vxor.u32 %v337, 2147483648
  %v343 = vsel %vm341, %v336, %v342
  %vm344 = vcmp.eq.s32.totalorder %v339, 2
  %v345 = vxor.u32 %v336, 2147483648
  %v346 = vsel %vm344, %v345, %v337
  %v347 = vsel %vm340, %v343, %v346
  %v348 = vsel %vm338, nan, %v347
  %v349 = vld [vmem:[%s2] sm:$0xff]
  %vm350 = vcmp.eq.f32.partialorder %v349, 1.0
  %v351 = vsel %vm350, 1, 0
  %v352 = vcvt.s32.f32 %v351
  %v353 = vsel %vm60, %v352, 0.0
  %vm354 = vcmp.eq.f32.partialorder %v349, 0.0
  %v355 = vsel %vm354, 1, 0
  %v356 = vcvt.s32.f32 %v355
  %v357 = vsel %vm60, %v356, 0.0
  %vm358 = vcmp.eq.s32.totalorder %v64, 0
  %360 = vset.pattern.permute.xlu0 0
  %361 = vperm.xlu0 %360, %v353
  %v362 = vpop.permute.xlu0 %361
  %v364 = vsel %vm358, %v362, 0.0
  %vm365 = vcmp.eq.s32.totalorder %v64, 1
  %367 = vset.pattern.permute.xlu0 0
  %368 = vperm.xlu0 %367, %v357
  %v369 = vpop.permute.xlu0 %368
  %v371 = vsel %vm365, %v369, 0.0
  %v372 = vadd.f32 %v364, %v371
  %373 = vxpose.xlu0.b32.start [1/16] %v372, 128
  %374 = vxpose.xlu0.b32.cont [2/16] 0.0, 128
  %375 = vxpose.xlu0.b32.cont [3/16] 0.0, 128
  %376 = vxpose.xlu0.b32.cont [4/16] 0.0, 128
  %377 = vxpose.xlu0.b32.cont [5/16] 0.0, 128
  %378 = vxpose.xlu0.b32.cont [6/16] 0.0, 128
  %379 = vxpose.xlu0.b32.cont [7/16] 0.0, 128
  %380 = vxpose.xlu0.b32.cont [8/16] 0.0, 128
  %381 = vxpose.xlu0.b32.cont [9/16] 0.0, 128
  %382 = vxpose.xlu0.b32.cont [10/16] 0.0, 128
  %383 = vxpose.xlu0.b32.cont [11/16] 0.0, 128
  %384 = vxpose.xlu0.b32.cont [12/16] 0.0, 128
  %385 = vxpose.xlu0.b32.cont [13/16] 0.0, 128
  %386 = vxpose.xlu0.b32.cont [14/16] 0.0, 128
  %387 = vxpose.xlu0.b32.cont [15/16] 0.0, 128
  %388 = vxpose.xlu0.b32.end [16/16] 0.0, 128
  %v389 = vpop.trf.xlu0
  %v390 = vpop.trf.xlu0
  %v391 = vpop.trf.xlu0
  %v392 = vpop.trf.xlu0
  %v393 = vpop.trf.xlu0
  %v394 = vpop.trf.xlu0
  %v395 = vpop.trf.xlu0
  %v396 = vpop.trf.xlu0
  %v397 = vpop.trf.xlu0
  %v398 = vpop.trf.xlu0
  %v399 = vpop.trf.xlu0
  %v400 = vpop.trf.xlu0
  %v401 = vpop.trf.xlu0
  %v402 = vpop.trf.xlu0
  %v403 = vpop.trf.xlu0
  %v404 = vpop.trf.xlu0
  %v406 = vsel %vm172, %v389, 0
  %408 = vmatprep.subr.mxu0 0.0
  %409 = vmatpush1.msra.mxu0 0.0
  %410 = vmatprep.subr.mxu0 0.0
  %411 = vmatpush1.msra.mxu0 0.0
  %412 = vmatprep.subr.mxu0 0.0
  %413 = vmatpush1.msra.mxu0 0.0
  %414 = vmatprep.subr.mxu0 0.0
  %415 = vmatpush1.msra.mxu0 0.0
  %416 = vmatprep.subr.mxu0 0.0
  %417 = vmatpush1.msra.mxu0 0.0
  %418 = vmatprep.subr.mxu0 0.0
  %419 = vmatpush1.msra.mxu0 0.0
  %420 = vmatprep.subr.mxu0 0.0
  %421 = vmatpush1.msra.mxu0 0.0
  %422 = vmatprep.subr.mxu0 0.0
  %423 = vmatpush1.msra.mxu0 0.0
  %424 = vmatprep.subr.mxu0 0.0
  %425 = vmatpush1.msra.mxu0 0.0
  %426 = vmatprep.subr.mxu0 0.0
  %427 = vmatpush1.msra.mxu0 0.0
  %428 = vmatprep.subr.mxu0 0.0
  %429 = vmatpush1.msra.mxu0 0.0
  %430 = vmatprep.subr.mxu0 0.0
  %431 = vmatpush1.msra.mxu0 0.0
  %432 = vmatprep.subr.mxu0 0.0
  %433 = vmatpush1.msra.mxu0 0.0
  %434 = vmatprep.subr.mxu0 0.0
  %435 = vmatpush1.msra.mxu0 0.0
  %436 = vmatprep.subr.mxu0 0.0
  %437 = vmatpush1.msra.mxu0 0.0
  %438 = vmatprep.subr.mxu0 0.0
  %439 = vmatpush1.msra.mxu0 %v348
  %440 = vmatprep.subr.mxu0 0.0
  %441 = vmatpush2.msra.mxu0 0.0
  %442 = vmatprep.subr.mxu0 0.0
  %443 = vmatpush2.msra.mxu0 0.0
  %444 = vmatprep.subr.mxu0 0.0
  %445 = vmatpush2.msra.mxu0 0.0
  %446 = vmatprep.subr.mxu0 0.0
  %447 = vmatpush2.msra.mxu0 0.0
  %448 = vmatprep.subr.mxu0 0.0
  %449 = vmatpush2.msra.mxu0 0.0
  %450 = vmatprep.subr.mxu0 0.0
  %451 = vmatpush2.msra.mxu0 0.0
  %452 = vmatprep.subr.mxu0 0.0
  %453 = vmatpush2.msra.mxu0 0.0
  %454 = vmatprep.subr.mxu0 0.0
  %455 = vmatpush2.msra.mxu0 0.0
  %456 = vmatprep.subr.mxu0 0.0
  %457 = vmatpush2.msra.mxu0 0.0
  %458 = vmatprep.subr.mxu0 0.0
  %459 = vmatpush2.msra.mxu0 0.0
  %460 = vmatprep.subr.mxu0 0.0
  %461 = vmatpush2.msra.mxu0 0.0
  %462 = vmatprep.subr.mxu0 0.0
  %463 = vmatpush2.msra.mxu0 0.0
  %464 = vmatprep.subr.mxu0 0.0
  %465 = vmatpush2.msra.mxu0 0.0
  %466 = vmatprep.subr.mxu0 0.0
  %467 = vmatpush2.msra.mxu0 0.0
  %468 = vmatprep.subr.mxu0 0.0
  %469 = vmatpush2.msra.mxu0 0.0
  %470 = vmatprep.subr.mxu0 0.0
  %471 = vmatpush2.msra.mxu0 0.0
  %472 = vmatprep.mubr.f32.mxu0 0.0
  %473 = vmatmul.mubr.f32.gmra.mxu0 %v406
  %v474 = vpop.f32.mrf.mxu0
  %v475 = vadd.f32 0.0, %v474
  %v476 = vpop.f32.mrf.mxu0
  %477 = vdwg.mxu0
  %v478 = vsel %vm88, %v353, 0.0
  %479 = vadd.xlane.f32.xlu0 %v478
  %v480 = vpop.xlane.xlu0 %479
  %v481 = vrot.slane %v480, 4
  %v482 = vadd.f32 %v480, %v481
  %v483 = vrot.slane %v482, 2
  %v484 = vadd.f32 %v482, %v483
  %v485 = vrot.slane %v484, 1
  %v486 = vadd.f32 %v484, %v485
  %s487 = vtos %v486
  %v488 = vsel %vm88, %v357, 0.0
  %489 = vadd.xlane.f32.xlu0 %v488
  %v490 = vpop.xlane.xlu0 %489
  %v491 = vrot.slane %v490, 4
  %v492 = vadd.f32 %v490, %v491
  %v493 = vrot.slane %v492, 2
  %v494 = vadd.f32 %v492, %v493
  %v495 = vrot.slane %v494, 1
  %v496 = vadd.f32 %v494, %v495
  %s497 = vtos %v496
  %v498 = vld [vmem:[%s14] sm:$0xff]
  %v499 = vadd.f32 %v498, %v475
  %500 = vst [vmem:[%s14] sm:$0xff] %v499
  %v501 = vstv %s98
  %v502 = vsel %vm358, %v501, 0.0
  %v503 = vstv %s487
  %v504 = vsel %vm365, %v503, 0.0
  %v505 = vadd.f32 %v502, %v504
  %vm506 = vcmp.eq.s32.totalorder %v64, 2
  %v507 = vstv %s497
  %v508 = vsel %vm506, %v507, 0.0
  %v509 = vadd.f32 %v505, %v508
  %v510 = vld [vmem:[%s15] sm:$0xff]
  %vm511 = vcmp.eq.s32.totalorder %v56, 0
  %v512 = vsel %vm511, %v120, 0.0
  %vm513 = vcmp.eq.s32.totalorder %v56, 1
  %v514 = vsel %vm513, %v137, 0.0
  %v515 = vadd.f32 %v512, %v514
  %vm516 = vcmp.eq.s32.totalorder %v56, 2
  %v517 = vsel %vm516, %v162, 0.0
  %v518 = vadd.f32 %v515, %v517
  %vm519 = vcmp.eq.s32.totalorder %v56, 3
  %v520 = vsel %vm519, %v509, 0.0
  %v521 = vadd.f32 %v518, %v520
  %v522 = vadd.f32 %v510, %v521
  %523 = vst [vmem:[%s15] sm:$0xff] %v522
  // Predicated region
  $region62: #{run.1} parent=0 // pred_check
    _
  $region63: #{run.1} parent=0 // pred_check_branch
    %525 = sbr.rel (0) target = $region65
  $region64: #{run.1} parent=0 // pred_region
    _
  $region65: #{run.1} parent=0 // pred_fallthru
    _
  // Predicated region
  $region66: #{run.1} parent=0 // pred_check
    _
  $region67: #{run.1} parent=0 // pred_check_branch
    %527 = sbr.rel (0) target = $region69
  $region68: #{run.1} parent=0 // pred_region
    _
  $region69: #{run.1} parent=0 // pred_fallthru
    _
  // Predicated region
  $region70: #{run.1} parent=0 // pred_check
    _
  $region71: #{run.1} parent=0 // pred_check_branch
    %529 = sbr.rel (0) target = $region73
  $region72: #{run.1} parent=0 // pred_region
    _
  $region73: #{run.1} parent=0 // pred_fallthru
    _
  // Predicated region
  $region74: #{run.1} parent=0 // pred_check
    _
  $region75: #{run.1} parent=0 // pred_check_branch
    %531 = sbr.rel (0) target = $region77
  $region76: #{run.1} parent=0 // pred_region
    _
  $region77: #{run.1} parent=0 // pred_fallthru
    _

</llo_original>
